<compile_context>
chip_gen: v7x
topology: tpu7x:2x2x1
jax: 0.10.0
libtpu: 0.0.40
codegen_flags: <defaults>
</compile_context>

<pallas_src>
import jax
import jax.numpy as jnp
from jax.experimental import pallas as pl
from jax.experimental.pallas import tpu as pltpu


def _make_f1_stats_kernel(n_rows, tile_n, tiles_per_core, any_masked):
    """Kernel accumulating per-class [tp, colsum(probs), colsum(labels)].

    Stats land in rows 0..2 of each core's resident (8, C) output block.
    """

    def accumulate(out_ref, lab_ref, stats_ref, tile_idx, masked):
        x = out_ref[...].astype(jnp.float32)      # (tile_n, C) logits
        lab = lab_ref[...].astype(jnp.float32)    # (tile_n, C) targets

        if masked:
            # Rows past N (partial last tile / phantom tile on the second
            # core) are zeroed *before* the softmax so padded/garbage data can
            # never create NaN/Inf.
            row = tile_idx * tile_n + jax.lax.broadcasted_iota(
                jnp.int32, (tile_n, 1), 0)
            valid = row < n_rows                  # (tile_n, 1), broadcasts on C
            x = jnp.where(valid, x, 0.0)
            lab = jnp.where(valid, lab, 0.0)

        # Row-wise softmax over the class (lane) axis; the division is folded
        # into one per-row reciprocal + a broadcast multiply.
        m = jnp.max(x, axis=1, keepdims=True)
        e = jnp.exp(x - m)
        inv_denom = pl.reciprocal(jnp.sum(e, axis=1, keepdims=True))
        probs = e * inv_denom

        if masked:
            # Padded rows still softmax to 1/C each; discard their mass.
            probs = jnp.where(valid, probs, 0.0)

        # tp       = colsum(labels * probs)
        # tp + fp  = colsum(probs)
        # tp + fn  = colsum(labels)
        stats_ref[0:1, :] += jnp.sum(lab * probs, axis=0, keepdims=True)
        stats_ref[1:2, :] += jnp.sum(probs, axis=0, keepdims=True)
        stats_ref[2:3, :] += jnp.sum(lab, axis=0, keepdims=True)

    def kernel(out_ref, lab_ref, stats_ref):
        c = pl.program_id(0)                      # core-split axis
        i = pl.program_id(1)                      # batch tile within a core

        @pl.when(i == 0)
        def _init():
            stats_ref[...] = jnp.zeros_like(stats_ref)

        tile_idx = c * tiles_per_core + i         # logical batch-tile index

        if any_masked:
            is_masked = (tile_idx + 1) * tile_n > n_rows

            @pl.when(is_masked)
            def _tail():                          # only the last / phantom tiles
                accumulate(out_ref, lab_ref, stats_ref, tile_idx, True)

            @pl.when(jnp.logical_not(is_masked))
            def _body():                          # unmasked fast path
                accumulate(out_ref, lab_ref, stats_ref, tile_idx, False)
        else:
            accumulate(out_ref, lab_ref, stats_ref, tile_idx, False)

    return kernel


def f1_loss(outputs, labels, *, tile_n=None, num_cores=2,
            vmem_budget_bytes=20 << 20):
    """Pallas TPU implementation of F1Loss.forward(outputs, labels)."""
    N, C = outputs.shape
    assert labels.shape == (N, C), (labels.shape, (N, C))

    out_isz = jnp.dtype(outputs.dtype).itemsize
    lab_isz = jnp.dtype(labels.dtype).itemsize

    # Sublane packing: f32 vregs hold (8, 128), bf16 (16, 128), int8/fp8
    # (32, 128); round the batch tile to the stricter (narrower-dtype) need.
    sublane = 32 // min(out_isz, lab_isz)

    if tile_n is None:
        # Per-row working set: 2 pipeline buffers per input in native dtype
        # plus ~4 f32 intermediates (x, lab, e, probs) from the upcast compute.
        bytes_per_row = C * (2 * (out_isz + lab_isz) + 4 * 4)
        tile_n = max(sublane, vmem_budget_bytes // bytes_per_row)
    if tile_n >= N:
        tile_n = N                                 # single full block (any N)
    else:
        tile_n = max(sublane, (tile_n // sublane) * sublane)

    grid_n = pl.cdiv(N, tile_n)                    # logical batch tiles
    num_cores = max(1, min(num_cores, grid_n))
    tiles_per_core = pl.cdiv(grid_n, num_cores)
    total_tiles = num_cores * tiles_per_core       # >= grid_n (may add phantoms)
    any_masked = total_tiles * tile_n > N          # partial and/or phantom tiles

    if total_tiles > grid_n:
        # Phantom tiles on the last core re-read the last real block (fully
        # masked in-kernel) so every block index stays in bounds.
        def in_map(c, i):
            return (jnp.minimum(c * tiles_per_core + i, grid_n - 1), 0)
    else:
        def in_map(c, i):
            return (c * tiles_per_core + i, 0)

    kernel = _make_f1_stats_kernel(N, tile_n, tiles_per_core, any_masked)

    in_bytes = N * C * (out_isz + lab_isz)
    cost = pl.CostEstimate(
        flops=8 * N * C,
        transcendentals=N * C + N,                 # exp/elem + reciprocal/row
        bytes_accessed=in_bytes + num_cores * 8 * C * 4,
    )

    # Scoped-VMEM request kept generation-safe (v7x only has 64 MiB per TC).
    vmem_limit = min(48 << 20, max(32 << 20, 2 * vmem_budget_bytes))

    partials = pl.pallas_call(
        kernel,
        out_shape=jax.ShapeDtypeStruct((num_cores * 8, C), jnp.float32),
        grid_spec=pltpu.PrefetchScalarGridSpec(
            num_scalar_prefetch=0,
            grid=(num_cores, tiles_per_core),
            in_specs=[
                pl.BlockSpec((tile_n, C), in_map),
                pl.BlockSpec((tile_n, C), in_map),
            ],
            out_specs=pl.BlockSpec((8, C), lambda c, i: (c, 0)),
        ),
        compiler_params=pltpu.CompilerParams(
            dimension_semantics=("parallel", "arbitrary"),
            vmem_limit_bytes=vmem_limit,
        ),
        cost_estimate=cost,
    )(outputs, labels)

    # Combine per-core partial stats (rows 3..7 of each block are zero pad).
    stats = jnp.sum(partials.reshape(num_cores, 8, C)[:, :3, :], axis=0)
    tp = stats[0]
    tp_fp = stats[1]       # = tp + fp  (column sum of probs)
    tp_fn = stats[2]       # = tp + fn  (column sum of labels)
    precision = tp / (tp_fp + 1e-10)
    recall = tp / (tp_fn + 1e-10)
    f1 = 2.0 * (precision * recall) / (precision + recall + 1e-10)
    return 1.0 - jnp.mean(f1)


def f1_loss_ref(outputs, labels):
    """Pure-JAX reference mirroring the PyTorch module."""
    probs = jax.nn.softmax(outputs.astype(jnp.float32), axis=1)
    labels = labels.astype(jnp.float32)
    tp = jnp.sum(labels * probs, axis=0)
    fp = jnp.sum((1.0 - labels) * probs, axis=0)
    fn = jnp.sum(labels * (1.0 - probs), axis=0)
    precision = tp / (tp + fp + 1e-10)
    recall = tp / (tp + fn + 1e-10)
    f1 = 2.0 * (precision * recall) / (precision + recall + 1e-10)
    return 1.0 - jnp.mean(f1)


if __name__ == "__main__":
    key = jax.random.PRNGKey(0)
    k_logits, k_labels = jax.random.split(key)

    N, C = 56, 32  # batch=56, classes=32
    outputs = jax.random.normal(k_logits, (N, C), dtype=jnp.float32)
    label_idx = jax.random.randint(k_labels, (N,), 0, C)
    labels = jax.nn.one_hot(label_idx, C, dtype=jnp.float32)

    ref = jax.block_until_ready(f1_loss_ref(outputs, labels))

    # Tiled + dual-core split: grid (2, 2), last tile partially masked (56 % 16).
    loss_tiled = jax.block_until_ready(f1_loss(outputs, labels, tile_n=16))
    assert jnp.allclose(loss_tiled, ref, atol=1e-5, rtol=1e-5), (loss_tiled, ref)

    # Default path: auto tile sizing (single full block, one core for this N).
    loss_auto = jax.block_until_ready(f1_loss(outputs, labels))
    assert jnp.allclose(loss_auto, ref, atol=1e-5, rtol=1e-5), (loss_auto, ref)

    # Odd tile count -> phantom (fully masked) tile on the second core.
    N2 = 40
    out2, lab2 = outputs[:N2], labels[:N2]
    ref2 = jax.block_until_ready(f1_loss_ref(out2, lab2))
    loss2 = jax.block_until_ready(f1_loss(out2, lab2, tile_n=16))
    assert jnp.allclose(loss2, ref2, atol=1e-5, rtol=1e-5), (loss2, ref2)

    # bf16 logits exercise the dtype-aware (16-row) sublane rounding + upcast.
    out_bf16 = outputs.astype(jnp.bfloat16)
    ref_bf16 = jax.block_until_ready(f1_loss_ref(out_bf16, labels))
    loss_bf16 = jax.block_until_ready(f1_loss(out_bf16, labels, tile_n=16))
    assert jnp.allclose(loss_bf16, ref_bf16, atol=1e-3, rtol=1e-3), (
        loss_bf16, ref_bf16)

    print("KERNEL_OK")
</pallas_src>

<mosaic_0001>
module attributes {stable_mosaic.version = 11 : i64} {
  func.func @kernel(%arg0: i32, %arg1: i32, %arg2: memref<16x32xf32, #tpu.memory_space<vmem>>, %arg3: memref<16x32xf32, #tpu.memory_space<vmem>>, %arg4: memref<8x32xf32, #tpu.memory_space<vmem>>) attributes {dimension_semantics = [#tpu.dimension_semantics<parallel>, #tpu.dimension_semantics<arbitrary>], iteration_bounds = array<i64: 2, 2>, scalar_prefetch = 0 : i64, scratch_operands = 0 : i64, tpu.core_type = #tpu.core_type<tc>, window_params = [{transform_indices = @transform_0, window_bounds = array<i64: 16, 32>}, {transform_indices = @transform_1, window_bounds = array<i64: 16, 32>}, {transform_indices = @transform_2, window_bounds = array<i64: 8, 32>}]} {
    %c0_i32 = arith.constant 0 : i32
    %0 = arith.cmpi eq, %arg1, %c0_i32 : i32
    %1 = arith.extui %0 : i1 to i32
    %c0_i32_0 = arith.constant 0 : i32
    %2 = arith.cmpi ne, %1, %c0_i32_0 : i32
    scf.if %2 {
      %cst = arith.constant 0.000000e+00 : f32
      %13 = vector.broadcast %cst : f32 to vector<8x32xf32>
      %c0 = arith.constant 0 : index
      %c0_3 = arith.constant 0 : index
      %14 = vector.load %arg4[%c0, %c0_3] : memref<8x32xf32, #tpu.memory_space<vmem>>, vector<8x32xf32>
      tpu.vector_store %arg4[%c0, %c0_3], %13 {strides = array<i32>} : memref<8x32xf32, #tpu.memory_space<vmem>>, vector<8x32xf32>,
    } else {
    }
    %c2_i32 = arith.constant 2 : i32
    %3 = arith.muli %arg0, %c2_i32 : i32
    %4 = arith.addi %3, %arg1 : i32
    %c1_i32 = arith.constant 1 : i32
    %5 = arith.addi %4, %c1_i32 : i32
    %c16_i32 = arith.constant 16 : i32
    %6 = arith.muli %5, %c16_i32 : i32
    %c56_i32 = arith.constant 56 : i32
    %7 = arith.cmpi sgt, %6, %c56_i32 : i32
    %8 = arith.extui %7 : i1 to i32
    %c0_i32_1 = arith.constant 0 : i32
    %9 = arith.cmpi ne, %8, %c0_i32_1 : i32
    scf.if %9 {
      %c0 = arith.constant 0 : index
      %c0_3 = arith.constant 0 : index
      %13 = vector.load %arg2[%c0, %c0_3] : memref<16x32xf32, #tpu.memory_space<vmem>>, vector<16x32xf32>
      %c0_4 = arith.constant 0 : index
      %c0_5 = arith.constant 0 : index
      %14 = vector.load %arg3[%c0_4, %c0_5] : memref<16x32xf32, #tpu.memory_space<vmem>>, vector<16x32xf32>
      %c16_i32_6 = arith.constant 16 : i32
      %15 = arith.muli %4, %c16_i32_6 : i32
      %16 = tpu.iota {dimensions = array<i32: 0>} : vector<16x1xi32>
      %17 = vector.broadcast %15 : i32 to vector<16x1xi32>
      %18 = arith.addi %17, %16 : vector<16x1xi32>
      %c56_i32_7 = arith.constant 56 : i32
      %19 = vector.broadcast %c56_i32_7 : i32 to vector<16x1xi32>
      %20 = arith.cmpi slt, %18, %19 : vector<16x1xi32>
      %cst = arith.constant 0.000000e+00 : f32
      %21 = vector.shape_cast %20 : vector<16x1xi1> to vector<16x1xi1>
      %22 = vector.broadcast %21 : vector<16x1xi1> to vector<16x32xi1>
      %23 = vector.broadcast %cst : f32 to vector<16x32xf32>
      %24 = arith.select %22, %13, %23 : vector<16x32xi1>, vector<16x32xf32>
      %cst_8 = arith.constant 0.000000e+00 : f32
      %25 = vector.shape_cast %20 : vector<16x1xi1> to vector<16x1xi1>
      %26 = vector.broadcast %25 : vector<16x1xi1> to vector<16x32xi1>
      %27 = vector.broadcast %cst_8 : f32 to vector<16x32xf32>
      %28 = arith.select %26, %14, %27 : vector<16x32xi1>, vector<16x32xf32>
      %cst_9 = arith.constant dense<0xFF800000> : vector<16xf32>
      %29 = vector.multi_reduction <maximumf>, %24, %cst_9 [1] : vector<16x32xf32> to vector<16xf32>
      %30 = vector.shape_cast %29 : vector<16xf32> to vector<16x1xf32>
      %31 = vector.broadcast %30 : vector<16x1xf32> to vector<16x32xf32>
      %32 = arith.subf %24, %31 : vector<16x32xf32>
      %33 = math.exp %32 : vector<16x32xf32>
      %cst_10 = arith.constant dense<0.000000e+00> : vector<16xf32>
      %34 = vector.multi_reduction <add>, %33, %cst_10 [1] : vector<16x32xf32> to vector<16xf32>
      %35 = vector.shape_cast %34 : vector<16xf32> to vector<16x1xf32>
      %36 = tpu.reciprocal %35 : vector<16x1xf32> -> vector<16x1xf32>
      %37 = vector.broadcast %36 : vector<16x1xf32> to vector<16x32xf32>
      %38 = arith.mulf %33, %37 : vector<16x32xf32>
      %cst_11 = arith.constant 0.000000e+00 : f32
      %39 = vector.shape_cast %20 : vector<16x1xi1> to vector<16x1xi1>
      %40 = vector.broadcast %39 : vector<16x1xi1> to vector<16x32xi1>
      %41 = vector.broadcast %cst_11 : f32 to vector<16x32xf32>
      %42 = arith.select %40, %38, %41 : vector<16x32xi1>, vector<16x32xf32>
      %c0_12 = arith.constant 0 : index
      %c0_13 = arith.constant 0 : index
      %43 = vector.load %arg4[%c0_12, %c0_13] : memref<8x32xf32, #tpu.memory_space<vmem>>, vector<1x32xf32>
      %44 = arith.mulf %28, %42 : vector<16x32xf32>
      %cst_14 = arith.constant dense<0.000000e+00> : vector<32xf32>
      %45 = vector.multi_reduction <add>, %44, %cst_14 [0] : vector<16x32xf32> to vector<32xf32>
      %46 = vector.shape_cast %45 : vector<32xf32> to vector<1x32xf32>
      %47 = arith.addf %43, %46 : vector<1x32xf32>
      %c0_15 = arith.constant 0 : index
      %c0_16 = arith.constant 0 : index
      %48 = vector.load %arg4[%c0_15, %c0_16] : memref<8x32xf32, #tpu.memory_space<vmem>>, vector<1x32xf32>
      tpu.vector_store %arg4[%c0_15, %c0_16], %47 {strides = array<i32>} : memref<8x32xf32, #tpu.memory_space<vmem>>, vector<1x32xf32>,
      %c1 = arith.constant 1 : index
      %c0_17 = arith.constant 0 : index
      %49 = vector.load %arg4[%c1, %c0_17] : memref<8x32xf32, #tpu.memory_space<vmem>>, vector<1x32xf32>
      %cst_18 = arith.constant dense<0.000000e+00> : vector<32xf32>
      %50 = vector.multi_reduction <add>, %42, %cst_18 [0] : vector<16x32xf32> to vector<32xf32>
      %51 = vector.shape_cast %50 : vector<32xf32> to vector<1x32xf32>
      %52 = arith.addf %49, %51 : vector<1x32xf32>
      %c1_19 = arith.constant 1 : index
      %c0_20 = arith.constant 0 : index
      %53 = vector.load %arg4[%c1_19, %c0_20] : memref<8x32xf32, #tpu.memory_space<vmem>>, vector<1x32xf32>
      tpu.vector_store %arg4[%c1_19, %c0_20], %52 {strides = array<i32>} : memref<8x32xf32, #tpu.memory_space<vmem>>, vector<1x32xf32>,
      %c2 = arith.constant 2 : index
      %c0_21 = arith.constant 0 : index
      %54 = vector.load %arg4[%c2, %c0_21] : memref<8x32xf32, #tpu.memory_space<vmem>>, vector<1x32xf32>
      %cst_22 = arith.constant dense<0.000000e+00> : vector<32xf32>
      %55 = vector.multi_reduction <add>, %28, %cst_22 [0] : vector<16x32xf32> to vector<32xf32>
      %56 = vector.shape_cast %55 : vector<32xf32> to vector<1x32xf32>
      %57 = arith.addf %54, %56 : vector<1x32xf32>
      %c2_23 = arith.constant 2 : index
      %c0_24 = arith.constant 0 : index
      %58 = vector.load %arg4[%c2_23, %c0_24] : memref<8x32xf32, #tpu.memory_space<vmem>>, vector<1x32xf32>
      tpu.vector_store %arg4[%c2_23, %c0_24], %57 {strides = array<i32>} : memref<8x32xf32, #tpu.memory_space<vmem>>, vector<1x32xf32>,
    } else {
    }
    %true = arith.constant true
    %10 = arith.xori %7, %true : i1
    %11 = arith.extui %10 : i1 to i32
    %c0_i32_2 = arith.constant 0 : i32
    %12 = arith.cmpi ne, %11, %c0_i32_2 : i32
    scf.if %12 {
      %c0 = arith.constant 0 : index
      %c0_3 = arith.constant 0 : index
      %13 = vector.load %arg2[%c0, %c0_3] : memref<16x32xf32, #tpu.memory_space<vmem>>, vector<16x32xf32>
      %c0_4 = arith.constant 0 : index
      %c0_5 = arith.constant 0 : index
      %14 = vector.load %arg3[%c0_4, %c0_5] : memref<16x32xf32, #tpu.memory_space<vmem>>, vector<16x32xf32>
      %cst = arith.constant dense<0xFF800000> : vector<16xf32>
      %15 = vector.multi_reduction <maximumf>, %13, %cst [1] : vector<16x32xf32> to vector<16xf32>
      %16 = vector.shape_cast %15 : vector<16xf32> to vector<16x1xf32>
      %17 = vector.broadcast %16 : vector<16x1xf32> to vector<16x32xf32>
      %18 = arith.subf %13, %17 : vector<16x32xf32>
      %19 = math.exp %18 : vector<16x32xf32>
      %cst_6 = arith.constant dense<0.000000e+00> : vector<16xf32>
      %20 = vector.multi_reduction <add>, %19, %cst_6 [1] : vector<16x32xf32> to vector<16xf32>
      %21 = vector.shape_cast %20 : vector<16xf32> to vector<16x1xf32>
      %22 = tpu.reciprocal %21 : vector<16x1xf32> -> vector<16x1xf32>
      %23 = vector.broadcast %22 : vector<16x1xf32> to vector<16x32xf32>
      %24 = arith.mulf %19, %23 : vector<16x32xf32>
      %c0_7 = arith.constant 0 : index
      %c0_8 = arith.constant 0 : index
      %25 = vector.load %arg4[%c0_7, %c0_8] : memref<8x32xf32, #tpu.memory_space<vmem>>, vector<1x32xf32>
      %26 = arith.mulf %14, %24 : vector<16x32xf32>
      %cst_9 = arith.constant dense<0.000000e+00> : vector<32xf32>
      %27 = vector.multi_reduction <add>, %26, %cst_9 [0] : vector<16x32xf32> to vector<32xf32>
      %28 = vector.shape_cast %27 : vector<32xf32> to vector<1x32xf32>
      %29 = arith.addf %25, %28 : vector<1x32xf32>
      %c0_10 = arith.constant 0 : index
      %c0_11 = arith.constant 0 : index
      %30 = vector.load %arg4[%c0_10, %c0_11] : memref<8x32xf32, #tpu.memory_space<vmem>>, vector<1x32xf32>
      tpu.vector_store %arg4[%c0_10, %c0_11], %29 {strides = array<i32>} : memref<8x32xf32, #tpu.memory_space<vmem>>, vector<1x32xf32>,
      %c1 = arith.constant 1 : index
      %c0_12 = arith.constant 0 : index
      %31 = vector.load %arg4[%c1, %c0_12] : memref<8x32xf32, #tpu.memory_space<vmem>>, vector<1x32xf32>
      %cst_13 = arith.constant dense<0.000000e+00> : vector<32xf32>
      %32 = vector.multi_reduction <add>, %24, %cst_13 [0] : vector<16x32xf32> to vector<32xf32>
      %33 = vector.shape_cast %32 : vector<32xf32> to vector<1x32xf32>
      %34 = arith.addf %31, %33 : vector<1x32xf32>
      %c1_14 = arith.constant 1 : index
      %c0_15 = arith.constant 0 : index
      %35 = vector.load %arg4[%c1_14, %c0_15] : memref<8x32xf32, #tpu.memory_space<vmem>>, vector<1x32xf32>
      tpu.vector_store %arg4[%c1_14, %c0_15], %34 {strides = array<i32>} : memref<8x32xf32, #tpu.memory_space<vmem>>, vector<1x32xf32>,
      %c2 = arith.constant 2 : index
      %c0_16 = arith.constant 0 : index
      %36 = vector.load %arg4[%c2, %c0_16] : memref<8x32xf32, #tpu.memory_space<vmem>>, vector<1x32xf32>
      %cst_17 = arith.constant dense<0.000000e+00> : vector<32xf32>
      %37 = vector.multi_reduction <add>, %14, %cst_17 [0] : vector<16x32xf32> to vector<32xf32>
      %38 = vector.shape_cast %37 : vector<32xf32> to vector<1x32xf32>
      %39 = arith.addf %36, %38 : vector<1x32xf32>
      %c2_18 = arith.constant 2 : index
      %c0_19 = arith.constant 0 : index
      %40 = vector.load %arg4[%c2_18, %c0_19] : memref<8x32xf32, #tpu.memory_space<vmem>>, vector<1x32xf32>
      tpu.vector_store %arg4[%c2_18, %c0_19], %39 {strides = array<i32>} : memref<8x32xf32, #tpu.memory_space<vmem>>, vector<1x32xf32>,
    } else {
    }
    return
  }
  func.func @transform_0(%arg0: i32, %arg1: i32) -> (i32, i32) {
    %c2_i32 = arith.constant 2 : i32
    %0 = arith.muli %arg0, %c2_i32 : i32
    %1 = arith.addi %0, %arg1 : i32
    %c0_i32 = arith.constant 0 : i32
    %c0_i32_0 = arith.constant 0 : i32
    return %1, %c0_i32 : i32, i32
  }
  func.func @transform_1(%arg0: i32, %arg1: i32) -> (i32, i32) {
    %c2_i32 = arith.constant 2 : i32
    %0 = arith.muli %arg0, %c2_i32 : i32
    %1 = arith.addi %0, %arg1 : i32
    %c0_i32 = arith.constant 0 : i32
    %c0_i32_0 = arith.constant 0 : i32
    return %1, %c0_i32 : i32, i32
  }
  func.func @transform_2(%arg0: i32, %arg1: i32) -> (i32, i32) {
    %c0_i32 = arith.constant 0 : i32
    %c0_i32_0 = arith.constant 0 : i32
    return %arg0, %c0_i32 : i32, i32
  }
}

</mosaic_0001>

<llo_original>
// kernel: tpu_custom_call.1
$region0: #{tpu_custom_call.1}
  #allocation0 [shape = 'u32[]', space=smem, size = 0x4, offset = 0x4, fixed_abs, tag = 'smem constant byte address 0x4 - core index']
  #allocation1 [shape = 'u32[144,128]{1,0:T(1,128)}', space=vmem, size = 0x12000, scoped, tag = 'internal scratch']
  %s0 = inlined_call_operand.vmem [shape: f32[56,32], index: 0, kind: input, shape index: {}]
  %s1 = inlined_call_operand.vmem [shape: f32[56,32], index: 1, kind: input, shape index: {}]
  %s2 = inlined_call_operand.hbm [shape: f32[16,32], index: 2, kind: output, shape index: {}]
  %s3 = sld [smem:[#allocation0]]
  $region53: #{tpu_custom_call.1} parent=0
    _
  %s5 = ssub.s32 1, %s3
  %s6 = scalar_select 0, %s5, %s3
  $region1: #{tpu_custom_call.1} parent=0
    #allocation2 [shape = 'u8[8192]{0}', space=vmem, size = 0x2000, scoped, tag = 'output window, operand 0']
    #allocation3 [shape = 's32[2]{0}', space=sflag, size = 0x8, scoped, tag = 'scoped memory for tpu_custom_call.1']
    %7 = vsyncpa [#allocation3], 0
    %s8 = scalar_lea.sflag [#allocation3], 1
    %9 = vsyncpa %s8, 0
    loop: start=0, step=1, limit=6
    $region2: #{tpu_custom_call.1} parent=1 // loop_pre_header
      _
    $region3: #{tpu_custom_call.1} parent=1 // loop_header
      %s11 = sphi 0, %s15
      %p12 = scmp.ge.s32.totalorder %s11, 6
      %s18 = sphi 0, %s30
      %s19 = sphi 0, %s26
      %s20 = sphi 0, %s18
      %s21 = sphi 0, %s19
      %s22 = sphi 0, %s20
      %s23 = sphi 0, %s21
      %s37 = sphi 0, %s39
      %s40 = sphi 0, %s37
      %s41 = sphi 0, %s40
      %s57 = sphi 0, %s41
      %s67 = sphi 0, %s69
      %s70 = sphi 0, %s67
      %s71 = sphi 0, %s70
      %s87 = sphi 0, %s71
      %s93 = sphi 0, %s95
      %s96 = sphi 0, %s93
      %s97 = sphi 0, %s96
      %s113 = sphi 0, %s97
    $region4: #{tpu_custom_call.1} parent=1 // loop_header_branch
      %14 = sbr.rel (%p12) target = $region8
    $region5: #{tpu_custom_call.1} parent=1 // loop_body
      %s16 = ssub.s32 %s11, 1
      %s17 = ssub.s32 %s11, 2
      %s24 = sadd.s32 1, %s19
      %p25 = scmp.ge.s32.totalorder %s24, 2
      %s26 = scalar_select %p25, 0, %s24
      %s27 = sadd.s32 1, %s18
      %s28 = scalar_select %p25, %s27, %s18
      %p29 = scmp.ge.s32.totalorder %s28, 2
      %s30 = scalar_select %p29, 0, %s28
      %s31 = smul.u32 %s18, 2
      %s32 = sadd.s32 %s31, %s19
      %s33 = smul.u32 %s30, 2
      %s34 = sadd.s32 %s33, %s26
      %s35 = ssub.s32 %s32, %s34
      %p36 = scmp.eq.s32.totalorder %s35, 0
      %s38 = sadd.s32 %s37, 1
      %s39 = scalar_select %p36, %s37, %s38
      %p42 = pneg %p36
      %p43 = scmp.eq.s32.totalorder %s11, 3
      %p44 = por %p42, %p43
      %p45 = scmp.ne.s32.totalorder %s37, %s40
      %p46 = scmp.eq.s32.totalorder %s11, 0
      %p47 = por %p45, %p46
      %p48 = scmp.ne.s32.totalorder %s37, %s40
      %p49 = scmp.eq.s32.totalorder %s16, 3
      %p50 = por %p48, %p49
      %p51 = scmp.ne.s32.totalorder %s40, %s41
      %p52 = scmp.eq.s32.totalorder %s16, 0
      %p53 = por %p51, %p52
      %p54 = scmp.ne.s32.totalorder %s40, %s41
      %p55 = scmp.eq.s32.totalorder %s17, 3
      %p56 = por %p54, %p55
      %p58 = scmp.ne.s32.totalorder %s41, %s57
      %p59 = scmp.eq.s32.totalorder %s17, 0
      %p60 = por %p58, %p59
      %s61 = smul.u32 %s18, 2
      %s62 = sadd.s32 %s61, %s19
      %s63 = smul.u32 %s30, 2
      %s64 = sadd.s32 %s63, %s26
      %s65 = ssub.s32 %s62, %s64
      %p66 = scmp.eq.s32.totalorder %s65, 0
      %s68 = sadd.s32 %s67, 1
      %s69 = scalar_select %p66, %s67, %s68
      %p72 = pneg %p66
      %p73 = scmp.eq.s32.totalorder %s11, 3
      %p74 = por %p72, %p73
      %p75 = scmp.ne.s32.totalorder %s67, %s70
      %p76 = scmp.eq.s32.totalorder %s11, 0
      %p77 = por %p75, %p76
      %p78 = scmp.ne.s32.totalorder %s67, %s70
      %p79 = scmp.eq.s32.totalorder %s16, 3
      %p80 = por %p78, %p79
      %p81 = scmp.ne.s32.totalorder %s70, %s71
      %p82 = scmp.eq.s32.totalorder %s16, 0
      %p83 = por %p81, %p82
      %p84 = scmp.ne.s32.totalorder %s70, %s71
      %p85 = scmp.eq.s32.totalorder %s17, 3
      %p86 = por %p84, %p85
      %p88 = scmp.ne.s32.totalorder %s71, %s87
      %p89 = scmp.eq.s32.totalorder %s17, 0
      %p90 = por %p88, %p89
      %s91 = ssub.s32 %s18, %s30
      %p92 = scmp.eq.s32.totalorder %s91, 0
      %s94 = sadd.s32 %s93, 1
      %s95 = scalar_select %p92, %s93, %s94
      %p98 = pneg %p92
      %p99 = scmp.eq.s32.totalorder %s11, 3
      %p100 = por %p98, %p99
      %p101 = scmp.ne.s32.totalorder %s93, %s96
      %p102 = scmp.eq.s32.totalorder %s11, 0
      %p103 = por %p101, %p102
      %p104 = scmp.ne.s32.totalorder %s93, %s96
      %p105 = scmp.eq.s32.totalorder %s16, 3
      %p106 = por %p104, %p105
      %p107 = scmp.ne.s32.totalorder %s96, %s97
      %p108 = scmp.eq.s32.totalorder %s16, 0
      %p109 = por %p107, %p108
      %p110 = scmp.ne.s32.totalorder %s96, %s97
      %p111 = scmp.eq.s32.totalorder %s17, 3
      %p112 = por %p110, %p111
      %p114 = scmp.ne.s32.totalorder %s97, %s113
      %p115 = scmp.eq.s32.totalorder %s17, 0
      %p116 = por %p114, %p115
      %p117 = scmp.le.s32.totalorder 1, %s11
      %p118 = scmp.lt.s32.totalorder %s11, 5
      %p119 = pnand %p117, %p118
      %p120 = pneg %p119
      // Predicated region
      $region9: #{tpu_custom_call.1} parent=5 // pred_check
        _
      $region10: #{tpu_custom_call.1} parent=5 // pred_check_branch
        %122 = sbr.rel (%p119) target = $region12
      $region11: #{tpu_custom_call.1} parent=5 // pred_region
        %s123 = ssub.s32 %s11, 1
      $region12: #{tpu_custom_call.1} parent=5 // pred_fallthru
        _
      %p124 = scmp.lt.s32.totalorder %s11, 4
      // Predicated region
      $region13: #{tpu_custom_call.1} parent=5 // pred_check
        %p125 = pneg %p124
      $region14: #{tpu_custom_call.1} parent=5 // pred_check_branch
        %127 = sbr.rel (%p125) target = $region16
      $region15: #{tpu_custom_call.1} parent=5 // pred_region
        // Predicated region
        $region17: #{tpu_custom_call.1} parent=15 // pred_check
          %p128 = pneg %p47
        $region18: #{tpu_custom_call.1} parent=15 // pred_check_branch
          %130 = sbr.rel (%p128) target = $region20
        $region19: #{tpu_custom_call.1} parent=15 // pred_region
          %s131 = smul.u32 %s18, 2
          %s132 = sadd.s32 %s131, %s19
          %s133 = smul.u32 2, %s132
          %s134 = ssub.s32 7, %s133
          %p135 = scmp.lt.s32.totalorder %s134, 2
          %s136 = scalar_select %p135, %s134, 2
          %s137 = smul.u32 128, %s136
          %p138 = scmp.lt.s32.totalorder %s133, 6
          %s139 = scalar_select %p138, %s133, 6
          %s140 = smul.addr %s139, 8
          %s141 = scalar_lea.vmem %s0, %s140
          %s142 = smul.u32 %s18, 2
          %s143 = sadd.s32 %s142, %s19
          %s144 = smul.u32 2, %s143
          %s145 = ssub.s32 7, %s144
          %p146 = scmp.lt.s32.totalorder %s145, 2
          %s147 = scalar_select %p146, %s145, 2
          %s148 = smul.u32 128, %s147
        $region20: #{tpu_custom_call.1} parent=15 // pred_fallthru
          _
        // Predicated region
        $region21: #{tpu_custom_call.1} parent=15 // pred_check
          %p149 = pneg %p77
        $region22: #{tpu_custom_call.1} parent=15 // pred_check_branch
          %151 = sbr.rel (%p149) target = $region24
        $region23: #{tpu_custom_call.1} parent=15 // pred_region
          %s152 = smul.u32 %s18, 2
          %s153 = sadd.s32 %s152, %s19
          %s154 = smul.u32 2, %s153
          %s155 = ssub.s32 7, %s154
          %p156 = scmp.lt.s32.totalorder %s155, 2
          %s157 = scalar_select %p156, %s155, 2
          %s158 = smul.u32 128, %s157
          %p159 = scmp.lt.s32.totalorder %s154, 6
          %s160 = scalar_select %p159, %s154, 6
          %s161 = smul.addr %s160, 8
          %s162 = scalar_lea.vmem %s1, %s161
          %s163 = smul.u32 %s18, 2
          %s164 = sadd.s32 %s163, %s19
          %s165 = smul.u32 2, %s164
          %s166 = ssub.s32 7, %s165
          %p167 = scmp.lt.s32.totalorder %s166, 2
          %s168 = scalar_select %p167, %s166, 2
          %s169 = smul.u32 128, %s168
        $region24: #{tpu_custom_call.1} parent=15 // pred_fallthru
          _
      $region16: #{tpu_custom_call.1} parent=5 // pred_fallthru
        _
      %p170 = scmp.le.s32.totalorder 1, %s11
      %p171 = scmp.lt.s32.totalorder %s11, 5
      %p172 = pnand %p170, %p171
      %p173 = pneg %p172
      // Predicated region
      $region25: #{tpu_custom_call.1} parent=5 // pred_check
        _
      $region26: #{tpu_custom_call.1} parent=5 // pred_check_branch
        %175 = sbr.rel (%p172) target = $region28
      $region27: #{tpu_custom_call.1} parent=5 // pred_region
        %s176 = ssub.s32 %s11, 1
        %s177 = smul.u32 %s20, 2
        %s178 = sadd.s32 %s177, %s21
        %s179 = smul.u32 2, %s178
        %s180 = ssub.s32 7, %s179
        %p181 = scmp.lt.s32.totalorder %s180, 2
        %s182 = scalar_select %p181, %s180, 2
        %s183 = smul.u32 128, %s182
        %p184 = scmp.lt.s32.totalorder %s179, 6
        %s185 = scalar_select %p184, %s179, 6
        %s186 = smul.addr %s185, 8
        %s187 = scalar_lea.vmem %s0, %s186
        %p188 = pneg %p53
        %p189 = pneg %p50
        %s190 = smul.u32 %s20, 2
        %s191 = sadd.s32 %s190, %s21
        %s192 = smul.u32 2, %s191
        %s193 = ssub.s32 7, %s192
        %p194 = scmp.lt.s32.totalorder %s193, 2
        %s195 = scalar_select %p194, %s193, 2
        %s196 = smul.u32 128, %s195
        %p197 = scmp.lt.s32.totalorder %s192, 6
        %s198 = scalar_select %p197, %s192, 6
        %s199 = smul.addr %s198, 8
        %s200 = scalar_lea.vmem %s1, %s199
        %p201 = pneg %p83
        %p202 = pneg %p80
        %p203 = pneg %p109
        %p204 = pneg %p106
        %s205 = sand.u32 %s96, 1
        %s206 = scalar_lea.sflag [#allocation3], %s205
        %s207 = sand.u32 %s96, 1
        %s208 = smul.addr %s207, 8
        %s209 = scalar_lea.vmem [#allocation2], %s208
        %s210 = smul.u32 %s20, 2
        %s211 = sadd.s32 %s210, %s21
        %s212 = smul.u32 2, %s211
        %s213 = ssub.s32 7, %s212
        %p214 = scmp.lt.s32.totalorder %s213, 2
        %s215 = scalar_select %p214, %s213, 2
        %s216 = smul.u32 128, %s215
        %p217 = scmp.lt.s32.totalorder %s212, 6
        %s218 = scalar_select %p217, %s212, 6
        %s219 = smul.addr %s218, 8
        %s220 = scalar_lea.vmem %s0, %s219
        %s221 = smul.u32 %s20, 2
        %s222 = sadd.s32 %s221, %s21
        %s223 = smul.u32 2, %s222
        %s224 = ssub.s32 7, %s223
        %p225 = scmp.lt.s32.totalorder %s224, 2
        %s226 = scalar_select %p225, %s224, 2
        %s227 = smul.u32 128, %s226
        %s228 = smul.u32 %s20, 2
        %s229 = sadd.s32 %s228, %s21
        %s230 = smul.u32 2, %s229
        %s231 = ssub.s32 7, %s230
        %p232 = scmp.lt.s32.totalorder %s231, 2
        %s233 = scalar_select %p232, %s231, 2
        %s234 = smul.u32 128, %s233
        %p235 = scmp.lt.s32.totalorder %s230, 6
        %s236 = scalar_select %p235, %s230, 6
        %s237 = smul.addr %s236, 8
        %s238 = scalar_lea.vmem %s1, %s237
        %s239 = smul.u32 %s20, 2
        %s240 = sadd.s32 %s239, %s21
        %s241 = smul.u32 2, %s240
        %s242 = ssub.s32 7, %s241
        %p243 = scmp.lt.s32.totalorder %s242, 2
        %s244 = scalar_select %p243, %s242, 2
        %s245 = smul.u32 128, %s244
        %p246 = scmp.eq.s32.totalorder %s21, 0
        // Predicated region
        $region29: #{tpu_custom_call.1} parent=27 // pred_check
          %p247 = pneg %p246
        $region30: #{tpu_custom_call.1} parent=27 // pred_check_branch
          %249 = sbr.rel (%p247) target = $region32
        $region31: #{tpu_custom_call.1} parent=27 // pred_region
          %vm250 = vcmask 261120
          %251 = vst.msk [vmem:[%s209] sm:$0xff] %vm250, 0.0
        $region32: #{tpu_custom_call.1} parent=27 // pred_fallthru
          _
        %s252 = smul.u32 %s20, 2
        %s253 = sadd.s32 %s252, %s21
        %s254 = sadd.s32 %s253, 1
        %s255 = smul.u32 %s254, 16
        %p256 = scmp.gt.s32.totalorder %s255, 56
        // Predicated region
        $region33: #{tpu_custom_call.1} parent=27 // pred_check
          %p257 = pneg %p256
        $region34: #{tpu_custom_call.1} parent=27 // pred_check_branch
          %259 = sbr.rel (%p257) target = $region36
        $region35: #{tpu_custom_call.1} parent=27 // pred_region
          %v260 = vld [vmem:[%s220] sm:$0xff]
          %v261 = vld [vmem:[%s220 + $0x8] sm:$0xff]
          %v262 = vld [vmem:[%s238] sm:$0xff]
          %v263 = vld [vmem:[%s238 + $0x8] sm:$0xff]
          %s264 = smul.u32 %s253, 16
          %v265 = vlaneseq
          %v266 = vshrl.u32 %v265, 7
          %v267 = vadd.s32 %v266, 8
          %v268 = vstv %s264
          %v269 = vadd.s32 %v268, %v266
          %v270 = vadd.s32 %v268, %v267
          %vm271 = vcmp.lt.s32.totalorder %v269, 56
          %vm272 = vcmp.lt.s32.totalorder %v270, 56
          %v273 = vsel %vm271, 1, 0
          %v274 = vsel %vm272, 1, 0
          %vm275 = vcmp.eq.s32.totalorder %v273, 1
          %vm276 = vcmp.eq.s32.totalorder %v274, 1
          %v277 = vsel %vm275, %v260, 0.0
          %v278 = vsel %vm276, %v261, 0.0
          %v279 = vsel %vm275, %v262, 0.0
          %v280 = vsel %vm276, %v263, 0.0
          %vm281 = vcmask 261120
          %v282 = vsel %vm281, %v277, -inf
          %283 = vmax.xlane.f32.xlu0 %v282
          %v284 = vpop.xlane.xlu0 %283
          %v285 = vsel %vm281, %v278, -inf
          %286 = vmax.xlane.f32.xlu0 %v285
          %v287 = vpop.xlane.xlu0 %286
          %v288 = vsub.f32 %v277, %v284
          %v289 = vsub.f32 %v278, %v287
          %v290 = vmul.f32 %v288, 1.442695
          %v291 = vpow.pop %v290
          %v292 = vmul.f32 %v289, 1.442695
          %v293 = vpow.pop %v292
          %v294 = vsel %vm281, %v291, 0.0
          %295 = vadd.xlane.f32.xlu0 %v294
          %v296 = vpop.xlane.xlu0 %295
          %v297 = vsel %vm281, %v293, 0.0
          %298 = vadd.xlane.f32.xlu0 %v297
          %v299 = vpop.xlane.xlu0 %298
          %v300 = vrcp.pop %v296
          %v301 = vrcp.pop %v299
          %v302 = vmul.f32 %v291, %v300
          %v303 = vmul.f32 %v293, %v301
          %v304 = vsel %vm275, %v302, 0.0
          %v305 = vsel %vm276, %v303, 0.0
          %v306 = vld [vmem:[%s209] sm:$0x1]
          %v307 = vmul.f32 %v279, %v304
          %v308 = vmul.f32 %v280, %v305
          %v309 = vsel %vm281, %v307, 0.0
          %v310 = vsel %vm281, %v308, 0.0
          %v311 = vadd.f32 %v309, %v310
          %v312 = vrot.slane %v311, 4
          %v313 = vadd.f32 %v311, %v312
          %v314 = vrot.slane %v313, 2
          %v315 = vadd.f32 %v313, %v314
          %v316 = vrot.slane %v315, 1
          %v317 = vadd.f32 %v315, %v316
          %v318 = vadd.f32 %v306, %v317
          %vm319 = vcmask 253952
          %320 = vst.msk [vmem:[%s209] sm:$0x1] %vm319, %v318
          %v321 = vld [vmem:[%s209 + $0x1] sm:$0x1]
          %v322 = vsel %vm281, %v304, 0.0
          %v323 = vsel %vm281, %v305, 0.0
          %v324 = vadd.f32 %v322, %v323
          %v325 = vrot.slane %v324, 4
          %v326 = vadd.f32 %v324, %v325
          %v327 = vrot.slane %v326, 2
          %v328 = vadd.f32 %v326, %v327
          %v329 = vrot.slane %v328, 1
          %v330 = vadd.f32 %v328, %v329
          %v331 = vadd.f32 %v321, %v330
          %332 = vst.msk [vmem:[%s209 + $0x1] sm:$0x1] %vm319, %v331
          %v333 = vld [vmem:[%s209 + $0x2] sm:$0x1]
          %v334 = vsel %vm281, %v279, 0.0
          %v335 = vsel %vm281, %v280, 0.0
          %v336 = vadd.f32 %v334, %v335
          %v337 = vrot.slane %v336, 4
          %v338 = vadd.f32 %v336, %v337
          %v339 = vrot.slane %v338, 2
          %v340 = vadd.f32 %v338, %v339
          %v341 = vrot.slane %v340, 1
          %v342 = vadd.f32 %v340, %v341
          %v343 = vadd.f32 %v333, %v342
          %344 = vst.msk [vmem:[%s209 + $0x2] sm:$0x1] %vm319, %v343
        $region36: #{tpu_custom_call.1} parent=27 // pred_fallthru
          _
        %p345 = scmp.le.s32.totalorder %s255, 56
        // Predicated region
        $region37: #{tpu_custom_call.1} parent=27 // pred_check
          %p346 = pneg %p345
        $region38: #{tpu_custom_call.1} parent=27 // pred_check_branch
          %348 = sbr.rel (%p346) target = $region40
        $region39: #{tpu_custom_call.1} parent=27 // pred_region
          %v349 = vld [vmem:[%s220] sm:$0xff]
          %v350 = vld [vmem:[%s220 + $0x8] sm:$0xff]
          %v351 = vld [vmem:[%s238] sm:$0xff]
          %v352 = vld [vmem:[%s238 + $0x8] sm:$0xff]
          %vm353 = vcmask 261120
          %v354 = vsel %vm353, %v349, -inf
          %355 = vmax.xlane.f32.xlu0 %v354
          %v356 = vpop.xlane.xlu0 %355
          %v357 = vsel %vm353, %v350, -inf
          %358 = vmax.xlane.f32.xlu0 %v357
          %v359 = vpop.xlane.xlu0 %358
          %v360 = vsub.f32 %v349, %v356
          %v361 = vsub.f32 %v350, %v359
          %v362 = vmul.f32 %v360, 1.442695
          %v363 = vpow.pop %v362
          %v364 = vmul.f32 %v361, 1.442695
          %v365 = vpow.pop %v364
          %v366 = vsel %vm353, %v363, 0.0
          %367 = vadd.xlane.f32.xlu0 %v366
          %v368 = vpop.xlane.xlu0 %367
          %v369 = vsel %vm353, %v365, 0.0
          %370 = vadd.xlane.f32.xlu0 %v369
          %v371 = vpop.xlane.xlu0 %370
          %v372 = vrcp.pop %v368
          %v373 = vrcp.pop %v371
          %v374 = vmul.f32 %v363, %v372
          %v375 = vmul.f32 %v365, %v373
          %v376 = vld [vmem:[%s209] sm:$0x1]
          %v377 = vmul.f32 %v351, %v374
          %v378 = vmul.f32 %v352, %v375
          %v379 = vsel %vm353, %v377, 0.0
          %v380 = vsel %vm353, %v378, 0.0
          %v381 = vadd.f32 %v379, %v380
          %v382 = vrot.slane %v381, 4
          %v383 = vadd.f32 %v381, %v382
          %v384 = vrot.slane %v383, 2
          %v385 = vadd.f32 %v383, %v384
          %v386 = vrot.slane %v385, 1
          %v387 = vadd.f32 %v385, %v386
          %v388 = vadd.f32 %v376, %v387
          %vm389 = vcmask 253952
          %390 = vst.msk [vmem:[%s209] sm:$0x1] %vm389, %v388
          %v391 = vld [vmem:[%s209 + $0x1] sm:$0x1]
          %v392 = vsel %vm353, %v374, 0.0
          %v393 = vsel %vm353, %v375, 0.0
          %v394 = vadd.f32 %v392, %v393
          %v395 = vrot.slane %v394, 4
          %v396 = vadd.f32 %v394, %v395
          %v397 = vrot.slane %v396, 2
          %v398 = vadd.f32 %v396, %v397
          %v399 = vrot.slane %v398, 1
          %v400 = vadd.f32 %v398, %v399
          %v401 = vadd.f32 %v391, %v400
          %402 = vst.msk [vmem:[%s209 + $0x1] sm:$0x1] %vm389, %v401
          %v403 = vld [vmem:[%s209 + $0x2] sm:$0x1]
          %v404 = vsel %vm353, %v351, 0.0
          %v405 = vsel %vm353, %v352, 0.0
          %v406 = vadd.f32 %v404, %v405
          %v407 = vrot.slane %v406, 4
          %v408 = vadd.f32 %v406, %v407
          %v409 = vrot.slane %v408, 2
          %v410 = vadd.f32 %v408, %v409
          %v411 = vrot.slane %v410, 1
          %v412 = vadd.f32 %v410, %v411
          %v413 = vadd.f32 %v403, %v412
          %414 = vst.msk [vmem:[%s209 + $0x2] sm:$0x1] %vm389, %v413
        $region40: #{tpu_custom_call.1} parent=27 // pred_fallthru
          _
        %s415 = sand.u32 %s96, 1
        %s416 = scalar_lea.sflag [#allocation3], %s415
        %s417 = sand.u32 %s96, 1
        %s418 = smul.addr %s417, 8
        %s419 = scalar_lea.vmem [#allocation2], %s418
        // Predicated region
        $region41: #{tpu_custom_call.1} parent=27 // pred_check
          %p420 = pneg %p106
        $region42: #{tpu_custom_call.1} parent=27 // pred_check_branch
          %422 = sbr.rel (%p420) target = $region44
        $region43: #{tpu_custom_call.1} parent=27 // pred_region
          %s424 = ssub.s32 128, 128
          %425 = vsyncadd %s416, %s424
          %s426 = smul.addr %s20, 128
          %s427 = scalar_lea.hbm %s2, %s426
          %s429 = sshll.u32 %s419, 4
          %s430 = int_to_ptr.vmem [resolvable:$true] %s429
          %432 = dma.vmem_to_hbm [thread:$0]  %s430, 128, %s427, %s416
        $region44: #{tpu_custom_call.1} parent=27 // pred_fallthru
          _
      $region28: #{tpu_custom_call.1} parent=5 // pred_fallthru
        _
      %p433 = scmp.le.s32.totalorder 2, %s11
      // Predicated region
      $region45: #{tpu_custom_call.1} parent=5 // pred_check
        %p434 = pneg %p433
      $region46: #{tpu_custom_call.1} parent=5 // pred_check_branch
        %436 = sbr.rel (%p434) target = $region48
      $region47: #{tpu_custom_call.1} parent=5 // pred_region
        %s437 = ssub.s32 %s11, 2
        // Predicated region
        $region49: #{tpu_custom_call.1} parent=47 // pred_check
          %p438 = pneg %p112
        $region50: #{tpu_custom_call.1} parent=47 // pred_check_branch
          %440 = sbr.rel (%p438) target = $region52
        $region51: #{tpu_custom_call.1} parent=47 // pred_region
          %s441 = sand.u32 %s97, 1
          %s442 = scalar_lea.sflag [#allocation3], %s441
          %s443 = sand.u32 %s97, 1
          %s444 = smul.addr %s443, 8
          %s445 = scalar_lea.vmem [#allocation2], %s444
          %446 = dma.done %s442, 128
        $region52: #{tpu_custom_call.1} parent=47 // pred_fallthru
          _
      $region48: #{tpu_custom_call.1} parent=5 // pred_fallthru
        _
    $region6: #{tpu_custom_call.1} parent=1 // loop_footer
      %s15 = sadd.s32 1, %s11
    $region7: #{tpu_custom_call.1} parent=1 // loop_footer_branch
      %10 = sbr.rel target = $region3
    $region8: #{tpu_custom_call.1} parent=1 // loop_exit
      _
    %447 = vsyncpa [#allocation3], 1
    %s448 = scalar_lea.sflag [#allocation3], 1
    %449 = vsyncpa %s448, 1

</llo_original>
